<compile_context>
chip_gen: v7x
topology: tpu7x:2x2x1
jax: 0.10.0
libtpu: 0.0.40
codegen_flags: <defaults>
</compile_context>

<pallas_src>
import math

import jax
import jax.numpy as jnp
from jax.experimental import pallas as pl
from jax.experimental.pallas import tpu as pltpu


LANE_W = 512  # lane-dense last dim for the aligned fast path (multiple of 128)


def _affine_clip_kernel(params_ref, x_ref, o_ref):
    """Elementwise y = clip(x * contrast + offset, 0, 1) on one tile.

    params_ref: (2,) f32 in SMEM = [contrast, offset].  Math in f32, store in
    the output dtype (bf16 inputs stream at half traffic).
    """
    c = params_ref[0]
    b = params_ref[1]
    x = x_ref[...].astype(jnp.float32)
    o_ref[...] = jnp.clip(x * c + b, 0.0, 1.0).astype(o_ref.dtype)


def _block_bytes_budget():
    """Per-block byte budget by TPU generation (review guidance).

    v6e/v7x: 4 MiB blocks (2 in + 2 out double-buffered = 16 MiB <= 32 MiB
    scoped default).  v5e / unknown: 2 MiB blocks (8 MiB <= 16 MiB default).
    """
    try:
        kind = jax.devices()[0].device_kind.lower()
    except Exception:
        kind = ""
    if "v7" in kind or "v6" in kind:
        return 4 * 1024 * 1024
    return 2 * 1024 * 1024


def _row_tile(rows, row_bytes, budget):
    """Largest row tile whose block stays within `budget` bytes.

    A tile equal to the full row count is always legal (block dim == array dim);
    when actually tiling, keep the sublane (second-to-last) dim a multiple of 8.
    """
    if rows * row_bytes <= budget:
        return rows
    t = max(budget // row_bytes, 8)
    t = (t // 8) * 8
    return max(min(t, rows), 1)


def _run_affine_clip(x2, params, *, budget, in_place=False):
    """Tiled elementwise transform on a 2-D slab `x2` with SMEM params."""
    rows, cols = x2.shape
    row_bytes = cols * x2.dtype.itemsize
    tile_r = _row_tile(rows, row_bytes, budget)
    grid = (pl.cdiv(rows, tile_r),)

    return pl.pallas_call(
        _affine_clip_kernel,
        out_shape=jax.ShapeDtypeStruct(x2.shape, x2.dtype),
        grid=grid,
        in_specs=[
            # Whole (2,) params array lives in SMEM; no recompiles per value.
            pl.BlockSpec(memory_space=pltpu.MemorySpace.SMEM),
            pl.BlockSpec((tile_r, cols), lambda i: (i, 0)),
        ],
        out_specs=pl.BlockSpec((tile_r, cols), lambda i: (i, 0)),
        compiler_params=pltpu.CompilerParams(
            # Independent tiles; lets v7x shard across both TensorCores.
            dimension_semantics=("parallel",),
        ),
        # Alias x -> out only when the caller also donates x at the jit
        # boundary; otherwise XLA would add a defensive copy.
        input_output_aliases=({1: 0} if in_place else {}),
    )(params, x2)


def _apply_fn_pallas(x, contrast, brightness, *, in_place=False):
    """clip(x * contrast + (0.5 - 0.5*contrast + brightness), 0, 1) via Pallas."""
    shape = x.shape
    total = math.prod(shape) if shape else 1
    if total == 0:
        return x

    offset = 0.5 - 0.5 * contrast + brightness
    params = jnp.stack(
        [jnp.asarray(contrast, jnp.float32), jnp.asarray(offset, jnp.float32)]
    )
    budget = _block_bytes_budget()

    if total % LANE_W == 0:
        # Fast path: zero-copy reshape to a lane-dense (rows, 512) slab.
        x2 = x.reshape(total // LANE_W, LANE_W)
    elif len(shape) >= 2:
        # Copy-free fallback: collapse leading dims, keep the natural last dim.
        # Possibly lane-sparse, but exactly 2x HBM traffic (no pad/slice copies).
        x2 = x.reshape(math.prod(shape[:-1]), shape[-1])
    else:
        # TODO(synk): rank<=1 arrays whose length is not a multiple of 512 fall
        # back to pad+slice (extra HBM copies); this never occurs for image batches.
        pad = (-total) % LANE_W
        xp = jnp.pad(x.reshape(-1), (0, pad))
        out = _run_affine_clip(xp.reshape(-1, LANE_W), params, budget=budget)
        return out.reshape(-1)[:total].reshape(shape)

    out2 = _run_affine_clip(x2, params, budget=budget, in_place=in_place)
    return out2.reshape(shape)


def random_apply(x, *, p, contrast, brightness, key, in_place=False):
    """With probability p apply the brightness/contrast fn to x, else identity.

    Matches torchvision's convention: skip iff random() > p, i.e. apply iff u <= p.

    NOTE(perf): under jit the identity branch still costs one full copy of x
    unless the caller donates x (jax.jit(..., donate_argnums=...)); pass
    in_place=True together with donation to let both branches reuse x's buffer.
    """
    u = jax.random.uniform(key, (), dtype=jnp.float32)
    apply_flag = u <= p
    return jax.lax.cond(
        apply_flag,
        lambda a: _apply_fn_pallas(a, contrast, brightness, in_place=in_place),
        lambda a: a,
        x,
    )


def _reference(x, *, p, contrast, brightness, key):
    u = jax.random.uniform(key, (), dtype=jnp.float32)
    y = jnp.clip(
        x.astype(jnp.float32) * contrast + (0.5 - 0.5 * contrast + brightness),
        0.0,
        1.0,
    ).astype(x.dtype)
    return jnp.where(u <= p, y, x)


if __name__ == "__main__":
    key = jax.random.PRNGKey(0)
    kx, ku = jax.random.split(key)

    contrast = 1.2
    brightness = 0.1

    ra = jax.jit(random_apply)

    # Case 1: small NCHW batch, force the "apply" branch (p=1.0). total=2048 -> aligned path.
    x = jax.random.uniform(kx, (2, 4, 16, 16), dtype=jnp.float32)
    out = ra(x, p=1.0, contrast=contrast, brightness=brightness, key=ku)
    jax.block_until_ready(out)
    ref = _reference(x, p=1.0, contrast=contrast, brightness=brightness, key=ku)
    assert out.shape == x.shape and out.dtype == x.dtype
    assert jnp.allclose(out, ref, atol=1e-6), "mismatch (apply branch)"

    # Case 2: force the identity branch (p=0.0) — bit-identical passthrough.
    out_id = ra(x, p=0.0, contrast=contrast, brightness=brightness, key=ku)
    jax.block_until_ready(out_id)
    assert jnp.array_equal(out_id, x), "mismatch (identity branch)"

    # Case 3: non-512-divisible total (2*3*28*28=4704) exercises the copy-free
    # collapsed (168, 28) fallback path, with a data-dependent coin flip (p=0.5).
    x2 = jax.random.uniform(ku, (2, 3, 28, 28), dtype=jnp.float32)
    out2 = ra(x2, p=0.5, contrast=contrast, brightness=brightness, key=ku)
    jax.block_until_ready(out2)
    ref2 = _reference(x2, p=0.5, contrast=contrast, brightness=brightness, key=ku)
    assert out2.shape == x2.shape and out2.dtype == x2.dtype
    assert jnp.allclose(out2, ref2, atol=1e-6), "mismatch (p=0.5 path)"

    # Case 4: bf16 input streams at half traffic (math in f32 inside the kernel).
    xb = x.astype(jnp.bfloat16)
    out_b = ra(xb, p=1.0, contrast=contrast, brightness=brightness, key=ku)
    jax.block_until_ready(out_b)
    ref_b = _reference(xb, p=1.0, contrast=contrast, brightness=brightness, key=ku)
    assert out_b.dtype == jnp.bfloat16
    assert jnp.allclose(
        out_b.astype(jnp.float32), ref_b.astype(jnp.float32), atol=2e-2
    ), "mismatch (bf16 path)"

    print("KERNEL_OK")
</pallas_src>

<mosaic_0001>
module attributes {stable_mosaic.version = 11 : i64} {
  func.func @_affine_clip_kernel(%arg0: i32, %arg1: memref<2xf32, #tpu.memory_space<smem>>, %arg2: memref<4x512xf32, #tpu.memory_space<vmem>>, %arg3: memref<4x512xf32, #tpu.memory_space<vmem>>) attributes {dimension_semantics = [#tpu.dimension_semantics<parallel>], iteration_bounds = array<i64: 1>, scalar_prefetch = 0 : i64, scratch_operands = 0 : i64, tpu.core_type = #tpu.core_type<tc>, window_params = [{transform_indices = @transform_0, window_bounds = array<i64: 2>}, {transform_indices = @transform_1, window_bounds = array<i64: 4, 512>}, {transform_indices = @transform_2, window_bounds = array<i64: 4, 512>}]} {
    %c0 = arith.constant 0 : index
    %0 = memref.load %arg1[%c0] : memref<2xf32, #tpu.memory_space<smem>>
    %c1 = arith.constant 1 : index
    %1 = memref.load %arg1[%c1] : memref<2xf32, #tpu.memory_space<smem>>
    %c0_0 = arith.constant 0 : index
    %c0_1 = arith.constant 0 : index
    %2 = vector.load %arg2[%c0_0, %c0_1] : memref<4x512xf32, #tpu.memory_space<vmem>>, vector<4x512xf32>
    %3 = vector.broadcast %0 : f32 to vector<4x512xf32>
    %4 = arith.mulf %2, %3 : vector<4x512xf32>
    %5 = vector.broadcast %1 : f32 to vector<4x512xf32>
    %6 = arith.addf %4, %5 : vector<4x512xf32>
    %cst = arith.constant 0.000000e+00 : f32
    %cst_2 = arith.constant 1.000000e+00 : f32
    %7 = vector.broadcast %cst : f32 to vector<4x512xf32>
    %8 = arith.maximumf %7, %6 : vector<4x512xf32>
    %9 = vector.broadcast %cst_2 : f32 to vector<4x512xf32>
    %10 = arith.minimumf %9, %8 : vector<4x512xf32>
    %c0_3 = arith.constant 0 : index
    %c0_4 = arith.constant 0 : index
    %11 = vector.load %arg3[%c0_3, %c0_4] : memref<4x512xf32, #tpu.memory_space<vmem>>, vector<4x512xf32>
    tpu.vector_store %arg3[%c0_3, %c0_4], %10 {strides = array<i32>} : memref<4x512xf32, #tpu.memory_space<vmem>>, vector<4x512xf32>,
    return
  }
  func.func @transform_0(%arg0: i32) -> i32 {
    %c0_i32 = arith.constant 0 : i32
    %c0_i32_0 = arith.constant 0 : i32
    return %c0_i32 : i32
  }
  func.func @transform_1(%arg0: i32) -> (i32, i32) {
    %c0_i32 = arith.constant 0 : i32
    %c0_i32_0 = arith.constant 0 : i32
    return %arg0, %c0_i32 : i32, i32
  }
  func.func @transform_2(%arg0: i32) -> (i32, i32) {
    %c0_i32 = arith.constant 0 : i32
    %c0_i32_0 = arith.constant 0 : i32
    return %arg0, %c0_i32 : i32, i32
  }
}

</mosaic_0001>

<llo_original>
// kernel: branch_1_fun.1
$region0: #{branch_1_fun.1}
  #allocation0 [shape = 'u32[]', space=smem, size = 0x4, offset = 0x4, fixed_abs, tag = 'smem constant byte address 0x4 - core index']
  #allocation1 [shape = 'u32[144,128]{1,0:T(1,128)}', space=vmem, size = 0x12000, scoped, tag = 'internal scratch']
  %s0 = inlined_call_operand.vmem [shape: f32[2], index: 0, kind: input, shape index: {}]
  %s1 = inlined_call_operand.vmem [shape: f32[4,512], index: 1, kind: input, shape index: {}]
  %s2 = inlined_call_operand.vmem [shape: f32[4,512], index: 2, kind: output, shape index: {}]
  %s3 = sld [smem:[#allocation0]]
  $region22: #{branch_1_fun.1} parent=0
    _
  %s5 = ssub.s32 1, %s3
  %s6 = scalar_select 0, %s5, %s3
  $region1: #{branch_1_fun.1} parent=0
    #allocation2 [shape = 'u8[512]{0}', space=smem, size = 0x200, scoped, tag = 'input window, operand 0, single buffered']
    #allocation3 [shape = 's32[1]{0}', space=sflag, size = 0x4, scoped, tag = 'scoped memory for branch_1_fun.1']
    %7 = vsyncpa [#allocation3], 0
    // Predicated region
    $region2: #{branch_1_fun.1} parent=1 // pred_check
      _
    $region3: #{branch_1_fun.1} parent=1 // pred_check_branch
      %9 = sbr.rel (0) target = $region5
    $region4: #{branch_1_fun.1} parent=1 // pred_region
      %s11 = ssub.s32 16, 16
      %12 = vsyncadd [#allocation3], %s11
      %s14 = sshll.u32 %s0, 4
      %s15 = int_to_ptr.vmem [resolvable:$true] %s14
      %17 = dma.vmem_to_smem %s15, 16, [#allocation2], [#allocation3]
    $region5: #{branch_1_fun.1} parent=1 // pred_fallthru
      _
    // Predicated region
    $region6: #{branch_1_fun.1} parent=1 // pred_check
      _
    $region7: #{branch_1_fun.1} parent=1 // pred_check_branch
      %19 = sbr.rel (0) target = $region9
    $region8: #{branch_1_fun.1} parent=1 // pred_region
      _
    $region9: #{branch_1_fun.1} parent=1 // pred_fallthru
      _
    // Predicated region
    $region10: #{branch_1_fun.1} parent=1 // pred_check
      _
    $region11: #{branch_1_fun.1} parent=1 // pred_check_branch
      %21 = sbr.rel (0) target = $region13
    $region12: #{branch_1_fun.1} parent=1 // pred_region
      %22 = dma.done [#allocation3], 16
    $region13: #{branch_1_fun.1} parent=1 // pred_fallthru
      _
    %23 = sfence
    %s24 = sld [smem:[#allocation2]]
    %s25 = sld [smem:[#allocation2 + $0x1]]
    %v26 = vld [vmem:[%s1] sm:$0xff]
    %v27 = vld [vmem:[%s1 + $0x8] sm:$0xff]
    %v28 = vstv %s24
    %v29 = vmul.f32 %v26, %v28
    %v30 = vmul.f32 %v27, %v28
    %v31 = vstv %s25
    %v32 = vadd.f32 %v29, %v31
    %v33 = vadd.f32 %v30, %v31
    %v34 = vmax.f32 %v32, 0.0
    %v35 = vmax.f32 %v33, 0.0
    %v36 = vmin.f32 %v34, 1.0
    %v37 = vmin.f32 %v35, 1.0
    %38 = vst [vmem:[%s2] sm:$0xff] %v36
    %39 = vst [vmem:[%s2 + $0x8] sm:$0xff] %v37
    // Predicated region
    $region14: #{branch_1_fun.1} parent=1 // pred_check
      _
    $region15: #{branch_1_fun.1} parent=1 // pred_check_branch
      %41 = sbr.rel (0) target = $region17
    $region16: #{branch_1_fun.1} parent=1 // pred_region
      _
    $region17: #{branch_1_fun.1} parent=1 // pred_fallthru
      _
    // Predicated region
    $region18: #{branch_1_fun.1} parent=1 // pred_check
      _
    $region19: #{branch_1_fun.1} parent=1 // pred_check_branch
      %43 = sbr.rel (0) target = $region21
    $region20: #{branch_1_fun.1} parent=1 // pred_region
      _
    $region21: #{branch_1_fun.1} parent=1 // pred_fallthru
      _
    %44 = vsyncpa [#allocation3], 1

</llo_original>
